<compile_context>
chip_gen: v7x
topology: tpu7x:2x2x1
jax: 0.10.0
libtpu: 0.0.40
codegen_flags: <defaults>
</compile_context>

<pallas_src>
import jax
import jax.numpy as jnp
from jax.experimental import pallas as pl
from jax.experimental.pallas import tpu as pltpu


def _round_up(n, m):
    return ((n + m - 1) // m) * m


def actor_kernel(x_ref, w1_ref, b1_ref, w2_ref, b2_ref, w3_ref, b3_ref, o_ref):
    # x_ref block is (T_TILE, B, D_in): T_TILE rollout steps' observation
    # batches.  Fold (T_TILE, B) into one tall row dimension for the MXU.
    t_tile, B, D = x_ref.shape
    x = x_ref[...].reshape(t_tile * B, D)

    # l1 + ReLU  (hidden lane-padded to 128; ReLU keeps pad columns at 0)
    z = jnp.dot(x, w1_ref[...], preferred_element_type=jnp.float32) + b1_ref[...]
    z = jnp.maximum(z, 0.0)

    # l2 + ReLU
    z = jnp.dot(z, w2_ref[...], preferred_element_type=jnp.float32) + b2_ref[...]
    z = jnp.maximum(z, 0.0)

    # l3 (logits, lane-padded output)
    z = jnp.dot(z, w3_ref[...], preferred_element_type=jnp.float32) + b3_ref[...]

    # Per-step softmax over the batch axis (== nn.Softmax(dim=0) applied to
    # each (B, out) step).  B is never padded/tiled, so the reduction over
    # axis=1 is complete and needs no masking.  Exact division (no approx
    # reciprocal) so probabilities sum to 1 to fp32 precision.
    z = z.reshape(t_tile, B, -1)
    m = jnp.max(z, axis=1, keepdims=True)
    e = jnp.exp(z - m)
    denom = jnp.sum(e, axis=1, keepdims=True)
    o_ref[...] = e / denom


def prepare_params(params):
    """One-time parameter prep: lane-pad hidden and output dims to 128.

    Returns (padded_params, out_dim).  Do this once, outside the per-call
    wrapper, so no pad ops run on every forward.
    """
    w1, b1, w2, b2, w3, b3 = params
    h1, h2 = w1.shape[1], w2.shape[1]
    out_dim = w3.shape[1]
    h1p, h2p = _round_up(h1, 128), _round_up(h2, 128)
    outp = _round_up(out_dim, 128)

    w1p = jnp.pad(w1, ((0, 0), (0, h1p - h1)))
    b1p = jnp.pad(b1, ((0, 0), (0, h1p - h1)))
    w2p = jnp.pad(w2, ((0, h1p - h1), (0, h2p - h2)))
    b2p = jnp.pad(b2, ((0, 0), (0, h2p - h2)))
    w3p = jnp.pad(w3, ((0, h2p - h2), (0, outp - out_dim)))
    b3p = jnp.pad(b3, ((0, 0), (0, outp - out_dim)))
    return (w1p, b1p, w2p, b2p, w3p, b3p), out_dim


def actor_forward(x, padded_params, out_dim, t_tile=None):
    """x: (B, input_dim) or (T, B, input_dim). Applies the actor per step."""
    w1, b1, w2, b2, w3, b3 = padded_params

    squeeze = x.ndim == 2
    if squeeze:
        x = x[None]                                   # (1, B, D)
    T, B, D = x.shape
    n_pad = w3.shape[1]

    if t_tile is None:
        if T >= 2:
            # >=2 blocks so both v7x TensorCores get work; cap the tile so
            # per-block activations stay far below scoped VMEM on every gen.
            t_tile = max(1, min(T, 512) // 2)
        else:
            t_tile = 1
    t_tile = min(t_tile, T)

    # Pad T to a multiple of t_tile (padded steps are computed and discarded;
    # they never influence the per-step softmax of real steps).
    T_pad = _round_up(T, t_tile)
    if T_pad != T:
        x = jnp.pad(x, ((0, T_pad - T), (0, 0), (0, 0)))
    grid = (T_pad // t_tile,)

    out = pl.pallas_call(
        actor_kernel,
        out_shape=jax.ShapeDtypeStruct((T_pad, B, n_pad), jnp.float32),
        grid=grid,
        in_specs=[
            # T_TILE rollout steps per block.
            pl.BlockSpec((t_tile, B, D), lambda t: (t, 0, 0)),
            # Weights/biases: constant index_map -> VMEM-resident across grid.
            pl.BlockSpec(w1.shape, lambda t: (0, 0)),
            pl.BlockSpec(b1.shape, lambda t: (0, 0)),
            pl.BlockSpec(w2.shape, lambda t: (0, 0)),
            pl.BlockSpec(b2.shape, lambda t: (0, 0)),
            pl.BlockSpec(w3.shape, lambda t: (0, 0)),
            pl.BlockSpec(b3.shape, lambda t: (0, 0)),
        ],
        out_specs=pl.BlockSpec((t_tile, B, n_pad), lambda t: (t, 0, 0)),
        compiler_params=pltpu.CompilerParams(
            dimension_semantics=("parallel",)),        # megacore split on v7x
    )(x, w1, b1, w2, b2, w3, b3)

    out = out[:T, :, :out_dim]                         # drop T / lane padding
    if squeeze:
        out = out[0]
    return out


def init_linear(key, fan_in, fan_out):
    # Deterministic init mimicking PyTorch nn.Linear default:
    # U(-1/sqrt(fan_in), 1/sqrt(fan_in)) for both weight and bias.
    kw, kb = jax.random.split(key)
    bound = 1.0 / jnp.sqrt(float(fan_in))
    w = jax.random.uniform(kw, (fan_in, fan_out), jnp.float32, -bound, bound)
    b = jax.random.uniform(kb, (1, fan_out), jnp.float32, -bound, bound)
    return w, b


def reference_forward(x, params):
    # Pure-JAX reference for a single (B, input_dim) observation batch.
    w1, b1, w2, b2, w3, b3 = params
    z = jnp.maximum(x @ w1 + b1, 0.0)
    z = jnp.maximum(z @ w2 + b2, 0.0)
    z = z @ w3 + b3
    return jax.nn.softmax(z, axis=0)


if __name__ == "__main__":
    key = jax.random.PRNGKey(0)
    k_x, k1, k2, k3 = jax.random.split(key, 4)

    steps = 16          # rollout steps processed in one pallas_call (2 blocks)
    batch = 8
    input_dim = 32
    hidden = 64
    output_dim = 4

    x = jax.random.normal(k_x, (steps, batch, input_dim), dtype=jnp.float32)

    w1, b1 = init_linear(k1, input_dim, hidden)
    w2, b2 = init_linear(k2, hidden, hidden)
    w3, b3 = init_linear(k3, hidden, output_dim)
    params = (w1, b1, w2, b2, w3, b3)

    # One-time parameter prep (lane padding hoisted out of the forward path).
    padded_params, odim = prepare_params(params)

    out = jax.block_until_ready(actor_forward(x, padded_params, odim))
    assert out.shape == (steps, batch, output_dim)

    ref = jax.vmap(lambda xt: reference_forward(xt, params))(x)
    assert jnp.allclose(out, ref, atol=1e-4, rtol=1e-4), "mismatch vs JAX reference"
    # softmax over dim=0 -> each column of each step sums to 1 (exact division)
    assert jnp.allclose(jnp.sum(out, axis=1),
                        jnp.ones((steps, output_dim)), atol=1e-4)

    # 2-D single-call path (same semantics as the original module's forward).
    out2 = jax.block_until_ready(actor_forward(x[0], padded_params, odim))
    assert out2.shape == (batch, output_dim)
    assert jnp.allclose(out2, ref[0], atol=1e-4, rtol=1e-4)

    print("KERNEL_OK")
</pallas_src>

<mosaic_0001>
module attributes {stable_mosaic.version = 11 : i64} {
  func.func @actor_kernel(%arg0: i32, %arg1: memref<8x8x32xf32, #tpu.memory_space<vmem>>, %arg2: memref<32x128xf32, #tpu.memory_space<vmem>>, %arg3: memref<1x128xf32, #tpu.memory_space<vmem>>, %arg4: memref<128x128xf32, #tpu.memory_space<vmem>>, %arg5: memref<1x128xf32, #tpu.memory_space<vmem>>, %arg6: memref<128x128xf32, #tpu.memory_space<vmem>>, %arg7: memref<1x128xf32, #tpu.memory_space<vmem>>, %arg8: memref<8x8x128xf32, #tpu.memory_space<vmem>>) attributes {dimension_semantics = [#tpu.dimension_semantics<parallel>], iteration_bounds = array<i64: 2>, scalar_prefetch = 0 : i64, scratch_operands = 0 : i64, tpu.core_type = #tpu.core_type<tc>, window_params = [{transform_indices = @transform_0, window_bounds = array<i64: 8, 8, 32>}, {pipeline_mode = #tpu.pipeline_mode<synchronous>, transform_indices = @transform_1, window_bounds = array<i64: 32, 128>}, {pipeline_mode = #tpu.pipeline_mode<synchronous>, transform_indices = @transform_2, window_bounds = array<i64: 1, 128>}, {pipeline_mode = #tpu.pipeline_mode<synchronous>, transform_indices = @transform_3, window_bounds = array<i64: 128, 128>}, {pipeline_mode = #tpu.pipeline_mode<synchronous>, transform_indices = @transform_4, window_bounds = array<i64: 1, 128>}, {pipeline_mode = #tpu.pipeline_mode<synchronous>, transform_indices = @transform_5, window_bounds = array<i64: 128, 128>}, {pipeline_mode = #tpu.pipeline_mode<synchronous>, transform_indices = @transform_6, window_bounds = array<i64: 1, 128>}, {transform_indices = @transform_7, window_bounds = array<i64: 8, 8, 128>}]} {
    %c0 = arith.constant 0 : index
    %c0_0 = arith.constant 0 : index
    %c0_1 = arith.constant 0 : index
    %0 = vector.load %arg1[%c0, %c0_0, %c0_1] : memref<8x8x32xf32, #tpu.memory_space<vmem>>, vector<8x8x32xf32>
    %1 = vector.shape_cast %0 : vector<8x8x32xf32> to vector<64x32xf32>
    %c0_2 = arith.constant 0 : index
    %c0_3 = arith.constant 0 : index
    %2 = vector.load %arg2[%c0_2, %c0_3] : memref<32x128xf32, #tpu.memory_space<vmem>>, vector<32x128xf32>
    %cst = arith.constant dense<0.000000e+00> : vector<64x128xf32>
    %3 = tpu.matmul %1, %2, %cst {dimension_numbers = #tpu.dot_dimension_numbers<[1], [0], [0], [1], [0, 0, 1, 1], [], []>} : vector<64x32xf32>, vector<32x128xf32>, vector<64x128xf32> -> vector<64x128xf32>
    %c0_4 = arith.constant 0 : index
    %c0_5 = arith.constant 0 : index
    %4 = vector.load %arg3[%c0_4, %c0_5] : memref<1x128xf32, #tpu.memory_space<vmem>>, vector<1x128xf32>
    %5 = vector.broadcast %4 : vector<1x128xf32> to vector<64x128xf32>
    %6 = arith.addf %3, %5 : vector<64x128xf32>
    %cst_6 = arith.constant 0.000000e+00 : f32
    %7 = vector.broadcast %cst_6 : f32 to vector<64x128xf32>
    %8 = arith.maximumf %6, %7 : vector<64x128xf32>
    %c0_7 = arith.constant 0 : index
    %c0_8 = arith.constant 0 : index
    %9 = vector.load %arg4[%c0_7, %c0_8] : memref<128x128xf32, #tpu.memory_space<vmem>>, vector<128x128xf32>
    %cst_9 = arith.constant dense<0.000000e+00> : vector<64x128xf32>
    %10 = tpu.matmul %8, %9, %cst_9 {dimension_numbers = #tpu.dot_dimension_numbers<[1], [0], [0], [1], [0, 0, 1, 1], [], []>} : vector<64x128xf32>, vector<128x128xf32>, vector<64x128xf32> -> vector<64x128xf32>
    %c0_10 = arith.constant 0 : index
    %c0_11 = arith.constant 0 : index
    %11 = vector.load %arg5[%c0_10, %c0_11] : memref<1x128xf32, #tpu.memory_space<vmem>>, vector<1x128xf32>
    %12 = vector.broadcast %11 : vector<1x128xf32> to vector<64x128xf32>
    %13 = arith.addf %10, %12 : vector<64x128xf32>
    %cst_12 = arith.constant 0.000000e+00 : f32
    %14 = vector.broadcast %cst_12 : f32 to vector<64x128xf32>
    %15 = arith.maximumf %13, %14 : vector<64x128xf32>
    %c0_13 = arith.constant 0 : index
    %c0_14 = arith.constant 0 : index
    %16 = vector.load %arg6[%c0_13, %c0_14] : memref<128x128xf32, #tpu.memory_space<vmem>>, vector<128x128xf32>
    %cst_15 = arith.constant dense<0.000000e+00> : vector<64x128xf32>
    %17 = tpu.matmul %15, %16, %cst_15 {dimension_numbers = #tpu.dot_dimension_numbers<[1], [0], [0], [1], [0, 0, 1, 1], [], []>} : vector<64x128xf32>, vector<128x128xf32>, vector<64x128xf32> -> vector<64x128xf32>
    %c0_16 = arith.constant 0 : index
    %c0_17 = arith.constant 0 : index
    %18 = vector.load %arg7[%c0_16, %c0_17] : memref<1x128xf32, #tpu.memory_space<vmem>>, vector<1x128xf32>
    %19 = vector.broadcast %18 : vector<1x128xf32> to vector<64x128xf32>
    %20 = arith.addf %17, %19 : vector<64x128xf32>
    %21 = vector.shape_cast %20 : vector<64x128xf32> to vector<8x8x128xf32>
    %cst_18 = arith.constant dense<0xFF800000> : vector<8x128xf32>
    %22 = vector.multi_reduction <maximumf>, %21, %cst_18 [1] : vector<8x8x128xf32> to vector<8x128xf32>
    %23 = vector.shape_cast %22 : vector<8x128xf32> to vector<8x1x128xf32>
    %24 = vector.broadcast %23 : vector<8x1x128xf32> to vector<8x8x128xf32>
    %25 = arith.subf %21, %24 : vector<8x8x128xf32>
    %26 = math.exp %25 : vector<8x8x128xf32>
    %cst_19 = arith.constant dense<0.000000e+00> : vector<8x128xf32>
    %27 = vector.multi_reduction <add>, %26, %cst_19 [1] : vector<8x8x128xf32> to vector<8x128xf32>
    %28 = vector.shape_cast %27 : vector<8x128xf32> to vector<8x1x128xf32>
    %29 = vector.broadcast %28 : vector<8x1x128xf32> to vector<8x8x128xf32>
    %30 = arith.divf %26, %29 : vector<8x8x128xf32>
    %c0_20 = arith.constant 0 : index
    %c0_21 = arith.constant 0 : index
    %c0_22 = arith.constant 0 : index
    %31 = vector.load %arg8[%c0_20, %c0_21, %c0_22] : memref<8x8x128xf32, #tpu.memory_space<vmem>>, vector<8x8x128xf32>
    tpu.vector_store %arg8[%c0_20, %c0_21, %c0_22], %30 {strides = array<i32>} : memref<8x8x128xf32, #tpu.memory_space<vmem>>, vector<8x8x128xf32>,
    return
  }
  func.func @transform_0(%arg0: i32) -> (i32, i32, i32) {
    %c0_i32 = arith.constant 0 : i32
    %c0_i32_0 = arith.constant 0 : i32
    %c0_i32_1 = arith.constant 0 : i32
    return %arg0, %c0_i32, %c0_i32_0 : i32, i32, i32
  }
  func.func @transform_1(%arg0: i32) -> (i32, i32) {
    %c0_i32 = arith.constant 0 : i32
    %c0_i32_0 = arith.constant 0 : i32
    %c0_i32_1 = arith.constant 0 : i32
    return %c0_i32, %c0_i32_0 : i32, i32
  }
  func.func @transform_2(%arg0: i32) -> (i32, i32) {
    %c0_i32 = arith.constant 0 : i32
    %c0_i32_0 = arith.constant 0 : i32
    %c0_i32_1 = arith.constant 0 : i32
    return %c0_i32, %c0_i32_0 : i32, i32
  }
  func.func @transform_3(%arg0: i32) -> (i32, i32) {
    %c0_i32 = arith.constant 0 : i32
    %c0_i32_0 = arith.constant 0 : i32
    %c0_i32_1 = arith.constant 0 : i32
    return %c0_i32, %c0_i32_0 : i32, i32
  }
  func.func @transform_4(%arg0: i32) -> (i32, i32) {
    %c0_i32 = arith.constant 0 : i32
    %c0_i32_0 = arith.constant 0 : i32
    %c0_i32_1 = arith.constant 0 : i32
    return %c0_i32, %c0_i32_0 : i32, i32
  }
  func.func @transform_5(%arg0: i32) -> (i32, i32) {
    %c0_i32 = arith.constant 0 : i32
    %c0_i32_0 = arith.constant 0 : i32
    %c0_i32_1 = arith.constant 0 : i32
    return %c0_i32, %c0_i32_0 : i32, i32
  }
  func.func @transform_6(%arg0: i32) -> (i32, i32) {
    %c0_i32 = arith.constant 0 : i32
    %c0_i32_0 = arith.constant 0 : i32
    %c0_i32_1 = arith.constant 0 : i32
    return %c0_i32, %c0_i32_0 : i32, i32
  }
  func.func @transform_7(%arg0: i32) -> (i32, i32, i32) {
    %c0_i32 = arith.constant 0 : i32
    %c0_i32_0 = arith.constant 0 : i32
    %c0_i32_1 = arith.constant 0 : i32
    return %arg0, %c0_i32, %c0_i32_0 : i32, i32, i32
  }
}

</mosaic_0001>

<llo_original>
// kernel: tpu_custom_call.1
$region0: #{tpu_custom_call.1}
  #allocation0 [shape = 'u32[]', space=smem, size = 0x4, offset = 0x4, fixed_abs, tag = 'smem constant byte address 0x4 - core index']
  #allocation1 [shape = 'u32[144,128]{1,0:T(1,128)}', space=vmem, size = 0x12000, scoped, tag = 'internal scratch']
  %s0 = inlined_call_operand.hbm [shape: f32[16,8,32], index: 0, kind: input, shape index: {}]
  %s1 = inlined_call_operand.hbm [shape: f32[32,128], index: 1, kind: input, shape index: {}]
  %s2 = inlined_call_operand.vmem [shape: f32[1,128], index: 2, kind: input, shape index: {}]
  %s3 = inlined_call_operand.hbm [shape: f32[128,128], index: 3, kind: input, shape index: {}]
  %s4 = inlined_call_operand.vmem [shape: f32[1,128], index: 4, kind: input, shape index: {}]
  %s5 = inlined_call_operand.hbm [shape: f32[128,128], index: 5, kind: input, shape index: {}]
  %s6 = inlined_call_operand.vmem [shape: f32[1,128], index: 6, kind: input, shape index: {}]
  %s7 = inlined_call_operand.hbm [shape: f32[16,8,128], index: 7, kind: output, shape index: {}]
  %s8 = sld [smem:[#allocation0]]
  $region77: #{tpu_custom_call.1} parent=0
    _
  %s10 = ssub.s32 1, %s8
  %s11 = scalar_select 0, %s10, %s8
  $region1: #{tpu_custom_call.1} parent=0
    #allocation2 [shape = 'u8[65536]{0}', space=vmem, size = 0x10000, scoped, tag = 'input window, operand 0']
    #allocation3 [shape = 's32[2]{0}', space=sflag, size = 0x8, scoped, tag = 'scoped memory for tpu_custom_call.1']
    #allocation4 [shape = 's32[2]{0}', space=sflag, size = 0x8, scoped, tag = 'scoped memory for tpu_custom_call.1']
    #allocation5 [shape = 'u8[16384]{0}', space=vmem, size = 0x4000, scoped, tag = 'input window, operand 1, single buffered']
    #allocation6 [shape = 's32[1]{0}', space=sflag, size = 0x4, scoped, tag = 'scoped memory for tpu_custom_call.1']
    #allocation7 [shape = 'u8[65536]{0}', space=vmem, size = 0x10000, scoped, tag = 'input window, operand 3, single buffered']
    #allocation8 [shape = 'u8[65536]{0}', space=vmem, size = 0x10000, scoped, tag = 'input window, operand 5, single buffered']
    #allocation9 [shape = 's32[1]{0}', space=sflag, size = 0x4, scoped, tag = 'scoped memory for tpu_custom_call.1']
    #allocation10 [shape = 'u8[65536]{0}', space=vmem, size = 0x10000, scoped, tag = 'output window, operand 0']
    %12 = vsyncpa [#allocation3], 0
    %s13 = scalar_lea.sflag [#allocation3], 1
    %14 = vsyncpa %s13, 0
    %15 = vsyncpa [#allocation6], 0
    %16 = vsyncpa [#allocation9], 0
    %17 = vsyncpa [#allocation4], 0
    %s18 = scalar_lea.sflag [#allocation4], 1
    %19 = vsyncpa %s18, 0
    loop: start=0, step=1, limit=4
    $region2: #{tpu_custom_call.1} parent=1 // loop_pre_header
      _
    $region3: #{tpu_custom_call.1} parent=1 // loop_header
      %s21 = sphi 0, %s25
      %p22 = scmp.ge.s32.totalorder %s21, 4
      %s31 = sphi 0, %s33
      %s34 = sphi 0, %s31
      %s35 = sphi 0, %s34
      %s51 = sphi 0, %s35
      %s55 = sphi 0, %s55
      %s57 = sphi 0, %s55
      %s58 = sphi 0, %s57
      %s72 = sphi 0, %s58
      %s76 = sphi 0, %s76
      %s78 = sphi 0, %s76
      %s79 = sphi 0, %s78
      %s93 = sphi 0, %s79
      %s97 = sphi 0, %s97
      %s99 = sphi 0, %s97
      %s100 = sphi 0, %s99
      %s114 = sphi 0, %s100
      %s118 = sphi 0, %s118
      %s120 = sphi 0, %s118
      %s121 = sphi 0, %s120
      %s135 = sphi 0, %s121
      %s139 = sphi 0, %s139
      %s141 = sphi 0, %s139
      %s142 = sphi 0, %s141
      %s156 = sphi 0, %s142
      %s160 = sphi 0, %s160
      %s162 = sphi 0, %s160
      %s163 = sphi 0, %s162
      %s177 = sphi 0, %s163
      %s183 = sphi 0, %s185
      %s186 = sphi 0, %s183
      %s187 = sphi 0, %s186
      %s203 = sphi 0, %s187
    $region4: #{tpu_custom_call.1} parent=1 // loop_header_branch
      %24 = sbr.rel (%p22) target = $region8
    $region5: #{tpu_custom_call.1} parent=1 // loop_body
      %s26 = ssub.s32 %s21, 1
      %s27 = ssub.s32 %s21, 2
      %s28 = sadd.s32 %s21, 1
      %s29 = ssub.s32 %s21, %s28
      %p30 = scmp.eq.s32.totalorder %s29, 0
      %s32 = sadd.s32 %s31, 1
      %s33 = scalar_select %p30, %s31, %s32
      %p36 = pneg %p30
      %p37 = scmp.eq.s32.totalorder %s21, 1
      %p38 = por %p36, %p37
      %p39 = scmp.ne.s32.totalorder %s31, %s34
      %p40 = scmp.eq.s32.totalorder %s21, 0
      %p41 = por %p39, %p40
      %p42 = scmp.ne.s32.totalorder %s31, %s34
      %p43 = scmp.eq.s32.totalorder %s26, 1
      %p44 = por %p42, %p43
      %p45 = scmp.ne.s32.totalorder %s34, %s35
      %p46 = scmp.eq.s32.totalorder %s26, 0
      %p47 = por %p45, %p46
      %p48 = scmp.ne.s32.totalorder %s34, %s35
      %p49 = scmp.eq.s32.totalorder %s27, 1
      %p50 = por %p48, %p49
      %p52 = scmp.ne.s32.totalorder %s35, %s51
      %p53 = scmp.eq.s32.totalorder %s27, 0
      %p54 = por %p52, %p53
      %s56 = sadd.s32 %s55, 1
      %p59 = scmp.eq.s32.totalorder %s21, 1
      %p60 = scmp.ne.s32.totalorder %s55, %s57
      %p61 = scmp.eq.s32.totalorder %s21, 0
      %p62 = por %p60, %p61
      %p63 = scmp.ne.s32.totalorder %s55, %s57
      %p64 = scmp.eq.s32.totalorder %s26, 1
      %p65 = por %p63, %p64
      %p66 = scmp.ne.s32.totalorder %s57, %s58
      %p67 = scmp.eq.s32.totalorder %s26, 0
      %p68 = por %p66, %p67
      %p69 = scmp.ne.s32.totalorder %s57, %s58
      %p70 = scmp.eq.s32.totalorder %s27, 1
      %p71 = por %p69, %p70
      %p73 = scmp.ne.s32.totalorder %s58, %s72
      %p74 = scmp.eq.s32.totalorder %s27, 0
      %p75 = por %p73, %p74
      %s77 = sadd.s32 %s76, 1
      %p80 = scmp.eq.s32.totalorder %s21, 1
      %p81 = scmp.ne.s32.totalorder %s76, %s78
      %p82 = scmp.eq.s32.totalorder %s21, 0
      %p83 = por %p81, %p82
      %p84 = scmp.ne.s32.totalorder %s76, %s78
      %p85 = scmp.eq.s32.totalorder %s26, 1
      %p86 = por %p84, %p85
      %p87 = scmp.ne.s32.totalorder %s78, %s79
      %p88 = scmp.eq.s32.totalorder %s26, 0
      %p89 = por %p87, %p88
      %p90 = scmp.ne.s32.totalorder %s78, %s79
      %p91 = scmp.eq.s32.totalorder %s27, 1
      %p92 = por %p90, %p91
      %p94 = scmp.ne.s32.totalorder %s79, %s93
      %p95 = scmp.eq.s32.totalorder %s27, 0
      %p96 = por %p94, %p95
      %s98 = sadd.s32 %s97, 1
      %p101 = scmp.eq.s32.totalorder %s21, 1
      %p102 = scmp.ne.s32.totalorder %s97, %s99
      %p103 = scmp.eq.s32.totalorder %s21, 0
      %p104 = por %p102, %p103
      %p105 = scmp.ne.s32.totalorder %s97, %s99
      %p106 = scmp.eq.s32.totalorder %s26, 1
      %p107 = por %p105, %p106
      %p108 = scmp.ne.s32.totalorder %s99, %s100
      %p109 = scmp.eq.s32.totalorder %s26, 0
      %p110 = por %p108, %p109
      %p111 = scmp.ne.s32.totalorder %s99, %s100
      %p112 = scmp.eq.s32.totalorder %s27, 1
      %p113 = por %p111, %p112
      %p115 = scmp.ne.s32.totalorder %s100, %s114
      %p116 = scmp.eq.s32.totalorder %s27, 0
      %p117 = por %p115, %p116
      %s119 = sadd.s32 %s118, 1
      %p122 = scmp.eq.s32.totalorder %s21, 1
      %p123 = scmp.ne.s32.totalorder %s118, %s120
      %p124 = scmp.eq.s32.totalorder %s21, 0
      %p125 = por %p123, %p124
      %p126 = scmp.ne.s32.totalorder %s118, %s120
      %p127 = scmp.eq.s32.totalorder %s26, 1
      %p128 = por %p126, %p127
      %p129 = scmp.ne.s32.totalorder %s120, %s121
      %p130 = scmp.eq.s32.totalorder %s26, 0
      %p131 = por %p129, %p130
      %p132 = scmp.ne.s32.totalorder %s120, %s121
      %p133 = scmp.eq.s32.totalorder %s27, 1
      %p134 = por %p132, %p133
      %p136 = scmp.ne.s32.totalorder %s121, %s135
      %p137 = scmp.eq.s32.totalorder %s27, 0
      %p138 = por %p136, %p137
      %s140 = sadd.s32 %s139, 1
      %p143 = scmp.eq.s32.totalorder %s21, 1
      %p144 = scmp.ne.s32.totalorder %s139, %s141
      %p145 = scmp.eq.s32.totalorder %s21, 0
      %p146 = por %p144, %p145
      %p147 = scmp.ne.s32.totalorder %s139, %s141
      %p148 = scmp.eq.s32.totalorder %s26, 1
      %p149 = por %p147, %p148
      %p150 = scmp.ne.s32.totalorder %s141, %s142
      %p151 = scmp.eq.s32.totalorder %s26, 0
      %p152 = por %p150, %p151
      %p153 = scmp.ne.s32.totalorder %s141, %s142
      %p154 = scmp.eq.s32.totalorder %s27, 1
      %p155 = por %p153, %p154
      %p157 = scmp.ne.s32.totalorder %s142, %s156
      %p158 = scmp.eq.s32.totalorder %s27, 0
      %p159 = por %p157, %p158
      %s161 = sadd.s32 %s160, 1
      %p164 = scmp.eq.s32.totalorder %s21, 1
      %p165 = scmp.ne.s32.totalorder %s160, %s162
      %p166 = scmp.eq.s32.totalorder %s21, 0
      %p167 = por %p165, %p166
      %p168 = scmp.ne.s32.totalorder %s160, %s162
      %p169 = scmp.eq.s32.totalorder %s26, 1
      %p170 = por %p168, %p169
      %p171 = scmp.ne.s32.totalorder %s162, %s163
      %p172 = scmp.eq.s32.totalorder %s26, 0
      %p173 = por %p171, %p172
      %p174 = scmp.ne.s32.totalorder %s162, %s163
      %p175 = scmp.eq.s32.totalorder %s27, 1
      %p176 = por %p174, %p175
      %p178 = scmp.ne.s32.totalorder %s163, %s177
      %p179 = scmp.eq.s32.totalorder %s27, 0
      %p180 = por %p178, %p179
      %s181 = ssub.s32 %s21, %s28
      %p182 = scmp.eq.s32.totalorder %s181, 0
      %s184 = sadd.s32 %s183, 1
      %s185 = scalar_select %p182, %s183, %s184
      %p188 = pneg %p182
      %p189 = scmp.eq.s32.totalorder %s21, 1
      %p190 = por %p188, %p189
      %p191 = scmp.ne.s32.totalorder %s183, %s186
      %p192 = scmp.eq.s32.totalorder %s21, 0
      %p193 = por %p191, %p192
      %p194 = scmp.ne.s32.totalorder %s183, %s186
      %p195 = scmp.eq.s32.totalorder %s26, 1
      %p196 = por %p194, %p195
      %p197 = scmp.ne.s32.totalorder %s186, %s187
      %p198 = scmp.eq.s32.totalorder %s26, 0
      %p199 = por %p197, %p198
      %p200 = scmp.ne.s32.totalorder %s186, %s187
      %p201 = scmp.eq.s32.totalorder %s27, 1
      %p202 = por %p200, %p201
      %p204 = scmp.ne.s32.totalorder %s187, %s203
      %p205 = scmp.eq.s32.totalorder %s27, 0
      %p206 = por %p204, %p205
      %p207 = scmp.le.s32.totalorder 1, %s21
      %p208 = scmp.lt.s32.totalorder %s21, 3
      %p209 = pnand %p207, %p208
      %p210 = pneg %p209
      // Predicated region
      $region9: #{tpu_custom_call.1} parent=5 // pred_check
        _
      $region10: #{tpu_custom_call.1} parent=5 // pred_check_branch
        %212 = sbr.rel (%p209) target = $region12
      $region11: #{tpu_custom_call.1} parent=5 // pred_region
        %s213 = ssub.s32 %s21, 1
        // Predicated region
        $region13: #{tpu_custom_call.1} parent=11 // pred_check
          %p214 = pneg %p68
        $region14: #{tpu_custom_call.1} parent=11 // pred_check_branch
          %216 = sbr.rel (%p214) target = $region16
        $region15: #{tpu_custom_call.1} parent=11 // pred_region
          %s218 = ssub.s32 512, 512
          %219 = vsyncadd [#allocation6], %s218
          %s220 = sshll.u32 [#allocation5], 4
          %s221 = int_to_ptr.vmem [resolvable:$true] %s220
          %226 = dma.hbm_to_vmem [thread:$0]  %s1, 512, %s221, [#allocation6], 128, 128, 8
        $region16: #{tpu_custom_call.1} parent=11 // pred_fallthru
          _
        // Predicated region
        $region17: #{tpu_custom_call.1} parent=11 // pred_check
          %p227 = pneg %p89
        $region18: #{tpu_custom_call.1} parent=11 // pred_check_branch
          %229 = sbr.rel (%p227) target = $region20
        $region19: #{tpu_custom_call.1} parent=11 // pred_region
          _
        $region20: #{tpu_custom_call.1} parent=11 // pred_fallthru
          _
        // Predicated region
        $region21: #{tpu_custom_call.1} parent=11 // pred_check
          %p230 = pneg %p110
        $region22: #{tpu_custom_call.1} parent=11 // pred_check_branch
          %232 = sbr.rel (%p230) target = $region24
        $region23: #{tpu_custom_call.1} parent=11 // pred_region
          %s234 = ssub.s32 2048, 2048
          %235 = vsyncadd [#allocation6], %s234
          %s236 = sshll.u32 [#allocation7], 4
          %s237 = int_to_ptr.vmem [resolvable:$true] %s236
          %242 = dma.hbm_to_vmem [thread:$0]  %s3, 2048, %s237, [#allocation6], 128, 128, 8
        $region24: #{tpu_custom_call.1} parent=11 // pred_fallthru
          _
        // Predicated region
        $region25: #{tpu_custom_call.1} parent=11 // pred_check
          %p243 = pneg %p131
        $region26: #{tpu_custom_call.1} parent=11 // pred_check_branch
          %245 = sbr.rel (%p243) target = $region28
        $region27: #{tpu_custom_call.1} parent=11 // pred_region
          _
        $region28: #{tpu_custom_call.1} parent=11 // pred_fallthru
          _
        // Predicated region
        $region29: #{tpu_custom_call.1} parent=11 // pred_check
          %p246 = pneg %p152
        $region30: #{tpu_custom_call.1} parent=11 // pred_check_branch
          %248 = sbr.rel (%p246) target = $region32
        $region31: #{tpu_custom_call.1} parent=11 // pred_region
          %s250 = ssub.s32 2048, 2048
          %251 = vsyncadd [#allocation9], %s250
          %s252 = sshll.u32 [#allocation8], 4
          %s253 = int_to_ptr.vmem [resolvable:$true] %s252
          %258 = dma.hbm_to_vmem [thread:$0]  %s5, 2048, %s253, [#allocation9], 128, 128, 8
        $region32: #{tpu_custom_call.1} parent=11 // pred_fallthru
          _
        // Predicated region
        $region33: #{tpu_custom_call.1} parent=11 // pred_check
          %p259 = pneg %p173
        $region34: #{tpu_custom_call.1} parent=11 // pred_check_branch
          %261 = sbr.rel (%p259) target = $region36
        $region35: #{tpu_custom_call.1} parent=11 // pred_region
          _
        $region36: #{tpu_custom_call.1} parent=11 // pred_fallthru
          _
      $region12: #{tpu_custom_call.1} parent=5 // pred_fallthru
        _
      %p262 = scmp.lt.s32.totalorder %s21, 2
      // Predicated region
      $region37: #{tpu_custom_call.1} parent=5 // pred_check
        %p263 = pneg %p262
      $region38: #{tpu_custom_call.1} parent=5 // pred_check_branch
        %265 = sbr.rel (%p263) target = $region40
      $region39: #{tpu_custom_call.1} parent=5 // pred_region
        // Predicated region
        $region41: #{tpu_custom_call.1} parent=39 // pred_check
          %p266 = pneg %p41
        $region42: #{tpu_custom_call.1} parent=39 // pred_check_branch
          %268 = sbr.rel (%p266) target = $region44
        $region43: #{tpu_custom_call.1} parent=39 // pred_region
          %s269 = sand.u32 %s31, 1
          %s270 = scalar_lea.sflag [#allocation3], %s269
          %s271 = sand.u32 %s31, 1
          %s272 = smul.addr %s271, 64
          %s273 = scalar_lea.vmem [#allocation2], %s272
          %s274 = smul.u32 8, %s21
          %s276 = ssub.s32 1024, 1024
          %277 = vsyncadd %s270, %s276
          %s278 = smul.addr %s274, 128
          %s279 = scalar_lea.hbm %s0, %s278
          %s280 = sshll.u32 %s273, 4
          %s281 = int_to_ptr.vmem [resolvable:$true] %s280
          %286 = dma.hbm_to_vmem [thread:$0]  %s279, 1024, %s281, %s270, 128, 128, 8
        $region44: #{tpu_custom_call.1} parent=39 // pred_fallthru
          _
      $region40: #{tpu_custom_call.1} parent=5 // pred_fallthru
        _
      %p287 = scmp.le.s32.totalorder 1, %s21
      %p288 = scmp.lt.s32.totalorder %s21, 3
      %p289 = pnand %p287, %p288
      %p290 = pneg %p289
      // Predicated region
      $region45: #{tpu_custom_call.1} parent=5 // pred_check
        _
      $region46: #{tpu_custom_call.1} parent=5 // pred_check_branch
        %292 = sbr.rel (%p289) target = $region48
      $region47: #{tpu_custom_call.1} parent=5 // pred_region
        %s293 = ssub.s32 %s21, 1
        %s294 = sand.u32 %s34, 1
        %s295 = scalar_lea.sflag [#allocation3], %s294
        %s296 = sand.u32 %s34, 1
        %s297 = smul.addr %s296, 64
        %s298 = scalar_lea.vmem [#allocation2], %s297
        // Predicated region
        $region49: #{tpu_custom_call.1} parent=47 // pred_check
          %p299 = pneg %p47
        $region50: #{tpu_custom_call.1} parent=47 // pred_check_branch
          %301 = sbr.rel (%p299) target = $region52
        $region51: #{tpu_custom_call.1} parent=47 // pred_region
          %302 = dma.done %s295, 1024
        $region52: #{tpu_custom_call.1} parent=47 // pred_fallthru
          _
        // Predicated region
        $region53: #{tpu_custom_call.1} parent=47 // pred_check
          %p303 = pneg %p68
        $region54: #{tpu_custom_call.1} parent=47 // pred_check_branch
          %305 = sbr.rel (%p303) target = $region56
        $region55: #{tpu_custom_call.1} parent=47 // pred_region
          %306 = dma.done [#allocation6], 512
        $region56: #{tpu_custom_call.1} parent=47 // pred_fallthru
          _
        // Predicated region
        $region57: #{tpu_custom_call.1} parent=47 // pred_check
          %p307 = pneg %p110
        $region58: #{tpu_custom_call.1} parent=47 // pred_check_branch
          %309 = sbr.rel (%p307) target = $region60
        $region59: #{tpu_custom_call.1} parent=47 // pred_region
          %310 = dma.done [#allocation6], 2048
        $region60: #{tpu_custom_call.1} parent=47 // pred_fallthru
          _
        // Predicated region
        $region61: #{tpu_custom_call.1} parent=47 // pred_check
          %p311 = pneg %p152
        $region62: #{tpu_custom_call.1} parent=47 // pred_check_branch
          %313 = sbr.rel (%p311) target = $region64
        $region63: #{tpu_custom_call.1} parent=47 // pred_region
          %314 = dma.done [#allocation9], 2048
        $region64: #{tpu_custom_call.1} parent=47 // pred_fallthru
          _
        %s315 = sand.u32 %s34, 1
        %s316 = scalar_lea.sflag [#allocation3], %s315
        %s317 = sand.u32 %s34, 1
        %s318 = smul.addr %s317, 64
        %s319 = scalar_lea.vmem [#allocation2], %s318
        %p320 = pneg %p47
        %p321 = pneg %p44
        %p322 = pneg %p68
        %p323 = pneg %p65
        %p324 = pneg %p89
        %p325 = pneg %p86
        %p326 = pneg %p110
        %p327 = pneg %p107
        %p328 = pneg %p131
        %p329 = pneg %p128
        %p330 = pneg %p152
        %p331 = pneg %p149
        %p332 = pneg %p173
        %p333 = pneg %p170
        %p334 = pneg %p199
        %p335 = pneg %p196
        %s336 = sand.u32 %s186, 1
        %s337 = scalar_lea.sflag [#allocation4], %s336
        %s338 = sand.u32 %s186, 1
        %s339 = smul.addr %s338, 64
        %s340 = scalar_lea.vmem [#allocation10], %s339
        %s341 = smul.u32 8, %s26
        %s342 = smul.u32 8, %s26
        %v343 = vld [vmem:[%s298] sm:$0xff]
        %v344 = vld [vmem:[%s298 + $0x8] sm:$0xff]
        %v345 = vld [vmem:[%s298 + $0x10] sm:$0xff]
        %v346 = vld [vmem:[%s298 + $0x18] sm:$0xff]
        %v347 = vld [vmem:[%s298 + $0x20] sm:$0xff]
        %v348 = vld [vmem:[%s298 + $0x28] sm:$0xff]
        %v349 = vld [vmem:[%s298 + $0x30] sm:$0xff]
        %v350 = vld [vmem:[%s298 + $0x38] sm:$0xff]
        %v351 = vld [vmem:[#allocation5] sm:$0xff]
        %v352 = vld [vmem:[#allocation5 + $0x8] sm:$0xff]
        %v353 = vld [vmem:[#allocation5 + $0x10] sm:$0xff]
        %v354 = vld [vmem:[#allocation5 + $0x18] sm:$0xff]
        %v355 = vld [vmem:[%s2] sm:$0x1]
        %v357 = vlaneseq
        %v358 = vshrl.u32 %v357, 7
        %v359 = vsub.s32 0, %v358
        %v360 = vrot.slane %v355, %v359
        %vm362 = vcmask 261120
        %v364 = vsel %vm362, %v343, 0
        %v367 = vsel %vm362, %v344, 0
        %v370 = vsel %vm362, %v345, 0
        %v373 = vsel %vm362, %v346, 0
        %v376 = vsel %vm362, %v347, 0
        %v379 = vsel %vm362, %v348, 0
        %v382 = vsel %vm362, %v349, 0
        %v385 = vsel %vm362, %v350, 0
        %387 = vmatprep.subr.mxu0 0.0
        %388 = vmatpush1.msra.mxu0 %v351
        %389 = vmatprep.subr.mxu0 0.0
        %390 = vmatpush1.msra.mxu0 %v352
        %391 = vmatprep.subr.mxu0 0.0
        %392 = vmatpush1.msra.mxu0 %v353
        %393 = vmatprep.subr.mxu0 0.0
        %394 = vmatpush1.msra.mxu0 %v354
        %395 = vmatprep.subr.mxu0 0.0
        %396 = vmatpush1.msra.mxu0 0.0
        %397 = vmatprep.subr.mxu0 0.0
        %398 = vmatpush1.msra.mxu0 0.0
        %399 = vmatprep.subr.mxu0 0.0
        %400 = vmatpush1.msra.mxu0 0.0
        %401 = vmatprep.subr.mxu0 0.0
        %402 = vmatpush1.msra.mxu0 0.0
        %403 = vmatprep.subr.mxu0 0.0
        %404 = vmatpush1.msra.mxu0 0.0
        %405 = vmatprep.subr.mxu0 0.0
        %406 = vmatpush1.msra.mxu0 0.0
        %407 = vmatprep.subr.mxu0 0.0
        %408 = vmatpush1.msra.mxu0 0.0
        %409 = vmatprep.subr.mxu0 0.0
        %410 = vmatpush1.msra.mxu0 0.0
        %411 = vmatprep.subr.mxu0 0.0
        %412 = vmatpush1.msra.mxu0 0.0
        %413 = vmatprep.subr.mxu0 0.0
        %414 = vmatpush1.msra.mxu0 0.0
        %415 = vmatprep.subr.mxu0 0.0
        %416 = vmatpush1.msra.mxu0 0.0
        %417 = vmatprep.subr.mxu0 0.0
        %418 = vmatpush1.msra.mxu0 0.0
        %419 = vmatprep.subr.mxu0 0.0
        %420 = vmatpush1.msra.mxu0 0.0
        %421 = vmatprep.subr.mxu0 0.0
        %422 = vmatpush1.msra.mxu0 0.0
        %423 = vmatprep.subr.mxu0 0.0
        %424 = vmatpush1.msra.mxu0 0.0
        %425 = vmatprep.subr.mxu0 0.0
        %426 = vmatpush1.msra.mxu0 0.0
        %427 = vmatprep.subr.mxu0 0.0
        %428 = vmatpush1.msra.mxu0 0.0
        %429 = vmatprep.subr.mxu0 0.0
        %430 = vmatpush1.msra.mxu0 0.0
        %431 = vmatprep.subr.mxu0 0.0
        %432 = vmatpush1.msra.mxu0 0.0
        %433 = vmatprep.subr.mxu0 0.0
        %434 = vmatpush1.msra.mxu0 0.0
        %435 = vmatprep.subr.mxu0 0.0
        %436 = vmatpush1.msra.mxu0 0.0
        %437 = vmatprep.subr.mxu0 0.0
        %438 = vmatpush1.msra.mxu0 0.0
        %439 = vmatprep.subr.mxu0 0.0
        %440 = vmatpush1.msra.mxu0 0.0
        %441 = vmatprep.subr.mxu0 0.0
        %442 = vmatpush1.msra.mxu0 0.0
        %443 = vmatprep.subr.mxu0 0.0
        %444 = vmatpush1.msra.mxu0 0.0
        %445 = vmatprep.subr.mxu0 0.0
        %446 = vmatpush1.msra.mxu0 0.0
        %447 = vmatprep.subr.mxu0 0.0
        %448 = vmatpush1.msra.mxu0 0.0
        %449 = vmatprep.subr.mxu0 0.0
        %450 = vmatpush1.msra.mxu0 0.0
        %451 = vmatprep.mubr.f32.mxu0 0.0
        %452 = vmatmul.mubr.f32.gmra.mrb[0].mxu0 %v364
        %v453 = vpop.f32.mrb[0].mxu0
        %v454 = vadd.f32 %v360, %v453
        %v455 = vpop.f32.mrb[0].mxu0
        %456 = vmatprep.mubr.f32.mxu0 0.0
        %457 = vmatmul.mubr.f32.gmra.mrb[0].mxu0 %v367
        %v458 = vpop.f32.mrb[0].mxu0
        %v459 = vadd.f32 %v360, %v458
        %v460 = vpop.f32.mrb[0].mxu0
        %461 = vmatprep.mubr.f32.mxu0 0.0
        %462 = vmatmul.mubr.f32.gmra.mrb[0].mxu0 %v370
        %v463 = vpop.f32.mrb[0].mxu0
        %v464 = vadd.f32 %v360, %v463
        %v465 = vpop.f32.mrb[0].mxu0
        %466 = vmatprep.mubr.f32.mxu0 0.0
        %467 = vmatmul.mubr.f32.gmra.mrb[0].mxu0 %v373
        %v468 = vpop.f32.mrb[0].mxu0
        %v469 = vadd.f32 %v360, %v468
        %v470 = vpop.f32.mrb[0].mxu0
        %471 = vmatprep.mubr.f32.mxu0 0.0
        %472 = vmatmul.mubr.f32.gmra.mrb[0].mxu0 %v376
        %v473 = vpop.f32.mrb[0].mxu0
        %v474 = vadd.f32 %v360, %v473
        %v475 = vpop.f32.mrb[0].mxu0
        %476 = vmatprep.mubr.f32.mxu0 0.0
        %477 = vmatmul.mubr.f32.gmra.mrb[0].mxu0 %v379
        %v478 = vpop.f32.mrb[0].mxu0
        %v479 = vadd.f32 %v360, %v478
        %v480 = vpop.f32.mrb[0].mxu0
        %481 = vmatprep.mubr.f32.mxu0 0.0
        %482 = vmatmul.mubr.f32.gmra.mrb[0].mxu0 %v382
        %v483 = vpop.f32.mrb[0].mxu0
        %v484 = vadd.f32 %v360, %v483
        %v485 = vpop.f32.mrb[0].mxu0
        %486 = vmatprep.mubr.f32.mxu0 0.0
        %487 = vmatmul.mubr.f32.gmra.mrb[0].mxu0 %v385
        %v488 = vpop.f32.mrb[0].mxu0
        %v489 = vadd.f32 %v360, %v488
        %v490 = vpop.f32.mrb[0].mxu0
        %491 = vdwg.mxu0
        %v492 = vmax.f32 %v454, 0.0
        %v493 = vmax.f32 %v459, 0.0
        %v494 = vmax.f32 %v464, 0.0
        %v495 = vmax.f32 %v469, 0.0
        %v496 = vmax.f32 %v474, 0.0
        %v497 = vmax.f32 %v479, 0.0
        %v498 = vmax.f32 %v484, 0.0
        %v499 = vmax.f32 %v489, 0.0
        %v500 = vld [vmem:[#allocation7] sm:$0xff]
        %v501 = vld [vmem:[#allocation7 + $0x8] sm:$0xff]
        %v502 = vld [vmem:[#allocation7 + $0x10] sm:$0xff]
        %v503 = vld [vmem:[#allocation7 + $0x18] sm:$0xff]
        %v504 = vld [vmem:[#allocation7 + $0x20] sm:$0xff]
        %v505 = vld [vmem:[#allocation7 + $0x28] sm:$0xff]
        %v506 = vld [vmem:[#allocation7 + $0x30] sm:$0xff]
        %v507 = vld [vmem:[#allocation7 + $0x38] sm:$0xff]
        %v508 = vld [vmem:[#allocation7 + $0x40] sm:$0xff]
        %v509 = vld [vmem:[#allocation7 + $0x48] sm:$0xff]
        %v510 = vld [vmem:[#allocation7 + $0x50] sm:$0xff]
        %v511 = vld [vmem:[#allocation7 + $0x58] sm:$0xff]
        %v512 = vld [vmem:[#allocation7 + $0x60] sm:$0xff]
        %v513 = vld [vmem:[#allocation7 + $0x68] sm:$0xff]
        %v514 = vld [vmem:[#allocation7 + $0x70] sm:$0xff]
        %v515 = vld [vmem:[#allocation7 + $0x78] sm:$0xff]
        %v516 = vld [vmem:[%s4] sm:$0x1]
        %v518 = vlaneseq
        %v519 = vshrl.u32 %v518, 7
        %v520 = vsub.s32 0, %v519
        %v521 = vrot.slane %v516, %v520
        %523 = vmatprep.subr.mxu0 0.0
        %524 = vmatpush1.msra.mxu0 %v500
        %525 = vmatprep.subr.mxu0 0.0
        %526 = vmatpush1.msra.mxu0 %v501
        %527 = vmatprep.subr.mxu0 0.0
        %528 = vmatpush1.msra.mxu0 %v502
        %529 = vmatprep.subr.mxu0 0.0
        %530 = vmatpush1.msra.mxu0 %v503
        %531 = vmatprep.subr.mxu0 0.0
        %532 = vmatpush1.msra.mxu0 %v504
        %533 = vmatprep.subr.mxu0 0.0
        %534 = vmatpush1.msra.mxu0 %v505
        %535 = vmatprep.subr.mxu0 0.0
        %536 = vmatpush1.msra.mxu0 %v506
        %537 = vmatprep.subr.mxu0 0.0
        %538 = vmatpush1.msra.mxu0 %v507
        %539 = vmatprep.subr.mxu0 0.0
        %540 = vmatpush1.msra.mxu0 %v508
        %541 = vmatprep.subr.mxu0 0.0
        %542 = vmatpush1.msra.mxu0 %v509
        %543 = vmatprep.subr.mxu0 0.0
        %544 = vmatpush1.msra.mxu0 %v510
        %545 = vmatprep.subr.mxu0 0.0
        %546 = vmatpush1.msra.mxu0 %v511
        %547 = vmatprep.subr.mxu0 0.0
        %548 = vmatpush1.msra.mxu0 %v512
        %549 = vmatprep.subr.mxu0 0.0
        %550 = vmatpush1.msra.mxu0 %v513
        %551 = vmatprep.subr.mxu0 0.0
        %552 = vmatpush1.msra.mxu0 %v514
        %553 = vmatprep.subr.mxu0 0.0
        %554 = vmatpush1.msra.mxu0 %v515
        %555 = vmatprep.subr.mxu0 0.0
        %556 = vmatpush1.msra.mxu0 0.0
        %557 = vmatprep.subr.mxu0 0.0
        %558 = vmatpush1.msra.mxu0 0.0
        %559 = vmatprep.subr.mxu0 0.0
        %560 = vmatpush1.msra.mxu0 0.0
        %561 = vmatprep.subr.mxu0 0.0
        %562 = vmatpush1.msra.mxu0 0.0
        %563 = vmatprep.subr.mxu0 0.0
        %564 = vmatpush1.msra.mxu0 0.0
        %565 = vmatprep.subr.mxu0 0.0
        %566 = vmatpush1.msra.mxu0 0.0
        %567 = vmatprep.subr.mxu0 0.0
        %568 = vmatpush1.msra.mxu0 0.0
        %569 = vmatprep.subr.mxu0 0.0
        %570 = vmatpush1.msra.mxu0 0.0
        %571 = vmatprep.subr.mxu0 0.0
        %572 = vmatpush1.msra.mxu0 0.0
        %573 = vmatprep.subr.mxu0 0.0
        %574 = vmatpush1.msra.mxu0 0.0
        %575 = vmatprep.subr.mxu0 0.0
        %576 = vmatpush1.msra.mxu0 0.0
        %577 = vmatprep.subr.mxu0 0.0
        %578 = vmatpush1.msra.mxu0 0.0
        %579 = vmatprep.subr.mxu0 0.0
        %580 = vmatpush1.msra.mxu0 0.0
        %581 = vmatprep.subr.mxu0 0.0
        %582 = vmatpush1.msra.mxu0 0.0
        %583 = vmatprep.subr.mxu0 0.0
        %584 = vmatpush1.msra.mxu0 0.0
        %585 = vmatprep.subr.mxu0 0.0
        %586 = vmatpush1.msra.mxu0 0.0
        %587 = vmatprep.mubr.f32.mxu0 0.0
        %588 = vmatmul.mubr.f32.gmra.mrb[0].mxu0 %v492
        %v589 = vpop.f32.mrb[0].mxu0
        %v590 = vadd.f32 %v521, %v589
        %v591 = vpop.f32.mrb[0].mxu0
        %592 = vmatprep.mubr.f32.mxu0 0.0
        %593 = vmatmul.mubr.f32.gmra.mrb[0].mxu0 %v493
        %v594 = vpop.f32.mrb[0].mxu0
        %v595 = vadd.f32 %v521, %v594
        %v596 = vpop.f32.mrb[0].mxu0
        %597 = vmatprep.mubr.f32.mxu0 0.0
        %598 = vmatmul.mubr.f32.gmra.mrb[0].mxu0 %v494
        %v599 = vpop.f32.mrb[0].mxu0
        %v600 = vadd.f32 %v521, %v599
        %v601 = vpop.f32.mrb[0].mxu0
        %602 = vmatprep.mubr.f32.mxu0 0.0
        %603 = vmatmul.mubr.f32.gmra.mrb[0].mxu0 %v495
        %v604 = vpop.f32.mrb[0].mxu0
        %v605 = vadd.f32 %v521, %v604
        %v606 = vpop.f32.mrb[0].mxu0
        %607 = vmatprep.mubr.f32.mxu0 0.0
        %608 = vmatmul.mubr.f32.gmra.mrb[0].mxu0 %v496
        %v609 = vpop.f32.mrb[0].mxu0
        %v610 = vadd.f32 %v521, %v609
        %v611 = vpop.f32.mrb[0].mxu0
        %612 = vmatprep.mubr.f32.mxu0 0.0
        %613 = vmatmul.mubr.f32.gmra.mrb[0].mxu0 %v497
        %v614 = vpop.f32.mrb[0].mxu0
        %v615 = vadd.f32 %v521, %v614
        %v616 = vpop.f32.mrb[0].mxu0
        %617 = vmatprep.mubr.f32.mxu0 0.0
        %618 = vmatmul.mubr.f32.gmra.mrb[0].mxu0 %v498
        %v619 = vpop.f32.mrb[0].mxu0
        %v620 = vadd.f32 %v521, %v619
        %v621 = vpop.f32.mrb[0].mxu0
        %622 = vmatprep.mubr.f32.mxu0 0.0
        %623 = vmatmul.mubr.f32.gmra.mrb[0].mxu0 %v499
        %v624 = vpop.f32.mrb[0].mxu0
        %v625 = vadd.f32 %v521, %v624
        %v626 = vpop.f32.mrb[0].mxu0
        %627 = vdwg.mxu0
        %v628 = vmax.f32 %v590, 0.0
        %v629 = vmax.f32 %v595, 0.0
        %v630 = vmax.f32 %v600, 0.0
        %v631 = vmax.f32 %v605, 0.0
        %v632 = vmax.f32 %v610, 0.0
        %v633 = vmax.f32 %v615, 0.0
        %v634 = vmax.f32 %v620, 0.0
        %v635 = vmax.f32 %v625, 0.0
        %v636 = vld [vmem:[#allocation8] sm:$0xff]
        %v637 = vld [vmem:[#allocation8 + $0x8] sm:$0xff]
        %v638 = vld [vmem:[#allocation8 + $0x10] sm:$0xff]
        %v639 = vld [vmem:[#allocation8 + $0x18] sm:$0xff]
        %v640 = vld [vmem:[#allocation8 + $0x20] sm:$0xff]
        %v641 = vld [vmem:[#allocation8 + $0x28] sm:$0xff]
        %v642 = vld [vmem:[#allocation8 + $0x30] sm:$0xff]
        %v643 = vld [vmem:[#allocation8 + $0x38] sm:$0xff]
        %v644 = vld [vmem:[#allocation8 + $0x40] sm:$0xff]
        %v645 = vld [vmem:[#allocation8 + $0x48] sm:$0xff]
        %v646 = vld [vmem:[#allocation8 + $0x50] sm:$0xff]
        %v647 = vld [vmem:[#allocation8 + $0x58] sm:$0xff]
        %v648 = vld [vmem:[#allocation8 + $0x60] sm:$0xff]
        %v649 = vld [vmem:[#allocation8 + $0x68] sm:$0xff]
        %v650 = vld [vmem:[#allocation8 + $0x70] sm:$0xff]
        %v651 = vld [vmem:[#allocation8 + $0x78] sm:$0xff]
        %v652 = vld [vmem:[%s6] sm:$0x1]
        %v654 = vlaneseq
        %v655 = vshrl.u32 %v654, 7
        %v656 = vsub.s32 0, %v655
        %v657 = vrot.slane %v652, %v656
        %659 = vmatprep.subr.mxu0 0.0
        %660 = vmatpush1.msra.mxu0 %v636
        %661 = vmatprep.subr.mxu0 0.0
        %662 = vmatpush1.msra.mxu0 %v637
        %663 = vmatprep.subr.mxu0 0.0
        %664 = vmatpush1.msra.mxu0 %v638
        %665 = vmatprep.subr.mxu0 0.0
        %666 = vmatpush1.msra.mxu0 %v639
        %667 = vmatprep.subr.mxu0 0.0
        %668 = vmatpush1.msra.mxu0 %v640
        %669 = vmatprep.subr.mxu0 0.0
        %670 = vmatpush1.msra.mxu0 %v641
        %671 = vmatprep.subr.mxu0 0.0
        %672 = vmatpush1.msra.mxu0 %v642
        %673 = vmatprep.subr.mxu0 0.0
        %674 = vmatpush1.msra.mxu0 %v643
        %675 = vmatprep.subr.mxu0 0.0
        %676 = vmatpush1.msra.mxu0 %v644
        %677 = vmatprep.subr.mxu0 0.0
        %678 = vmatpush1.msra.mxu0 %v645
        %679 = vmatprep.subr.mxu0 0.0
        %680 = vmatpush1.msra.mxu0 %v646
        %681 = vmatprep.subr.mxu0 0.0
        %682 = vmatpush1.msra.mxu0 %v647
        %683 = vmatprep.subr.mxu0 0.0
        %684 = vmatpush1.msra.mxu0 %v648
        %685 = vmatprep.subr.mxu0 0.0
        %686 = vmatpush1.msra.mxu0 %v649
        %687 = vmatprep.subr.mxu0 0.0
        %688 = vmatpush1.msra.mxu0 %v650
        %689 = vmatprep.subr.mxu0 0.0
        %690 = vmatpush1.msra.mxu0 %v651
        %691 = vmatprep.subr.mxu0 0.0
        %692 = vmatpush1.msra.mxu0 0.0
        %693 = vmatprep.subr.mxu0 0.0
        %694 = vmatpush1.msra.mxu0 0.0
        %695 = vmatprep.subr.mxu0 0.0
        %696 = vmatpush1.msra.mxu0 0.0
        %697 = vmatprep.subr.mxu0 0.0
        %698 = vmatpush1.msra.mxu0 0.0
        %699 = vmatprep.subr.mxu0 0.0
        %700 = vmatpush1.msra.mxu0 0.0
        %701 = vmatprep.subr.mxu0 0.0
        %702 = vmatpush1.msra.mxu0 0.0
        %703 = vmatprep.subr.mxu0 0.0
        %704 = vmatpush1.msra.mxu0 0.0
        %705 = vmatprep.subr.mxu0 0.0
        %706 = vmatpush1.msra.mxu0 0.0
        %707 = vmatprep.subr.mxu0 0.0
        %708 = vmatpush1.msra.mxu0 0.0
        %709 = vmatprep.subr.mxu0 0.0
        %710 = vmatpush1.msra.mxu0 0.0
        %711 = vmatprep.subr.mxu0 0.0
        %712 = vmatpush1.msra.mxu0 0.0
        %713 = vmatprep.subr.mxu0 0.0
        %714 = vmatpush1.msra.mxu0 0.0
        %715 = vmatprep.subr.mxu0 0.0
        %716 = vmatpush1.msra.mxu0 0.0
        %717 = vmatprep.subr.mxu0 0.0
        %718 = vmatpush1.msra.mxu0 0.0
        %719 = vmatprep.subr.mxu0 0.0
        %720 = vmatpush1.msra.mxu0 0.0
        %721 = vmatprep.subr.mxu0 0.0
        %722 = vmatpush1.msra.mxu0 0.0
        %723 = vmatprep.mubr.f32.mxu0 0.0
        %724 = vmatmul.mubr.f32.gmra.mrb[0].mxu0 %v628
        %v725 = vpop.f32.mrb[0].mxu0
        %v726 = vadd.f32 %v657, %v725
        %v727 = vpop.f32.mrb[0].mxu0
        %728 = vmatprep.mubr.f32.mxu0 0.0
        %729 = vmatmul.mubr.f32.gmra.mrb[0].mxu0 %v629
        %v730 = vpop.f32.mrb[0].mxu0
        %v731 = vadd.f32 %v657, %v730
        %v732 = vpop.f32.mrb[0].mxu0
        %733 = vmatprep.mubr.f32.mxu0 0.0
        %734 = vmatmul.mubr.f32.gmra.mrb[0].mxu0 %v630
        %v735 = vpop.f32.mrb[0].mxu0
        %v736 = vadd.f32 %v657, %v735
        %v737 = vpop.f32.mrb[0].mxu0
        %738 = vmatprep.mubr.f32.mxu0 0.0
        %739 = vmatmul.mubr.f32.gmra.mrb[0].mxu0 %v631
        %v740 = vpop.f32.mrb[0].mxu0
        %v741 = vadd.f32 %v657, %v740
        %v742 = vpop.f32.mrb[0].mxu0
        %743 = vmatprep.mubr.f32.mxu0 0.0
        %744 = vmatmul.mubr.f32.gmra.mrb[0].mxu0 %v632
        %v745 = vpop.f32.mrb[0].mxu0
        %v746 = vadd.f32 %v657, %v745
        %v747 = vpop.f32.mrb[0].mxu0
        %748 = vmatprep.mubr.f32.mxu0 0.0
        %749 = vmatmul.mubr.f32.gmra.mrb[0].mxu0 %v633
        %v750 = vpop.f32.mrb[0].mxu0
        %v751 = vadd.f32 %v657, %v750
        %v752 = vpop.f32.mrb[0].mxu0
        %753 = vmatprep.mubr.f32.mxu0 0.0
        %754 = vmatmul.mubr.f32.gmra.mrb[0].mxu0 %v634
        %v755 = vpop.f32.mrb[0].mxu0
        %v756 = vadd.f32 %v657, %v755
        %v757 = vpop.f32.mrb[0].mxu0
        %758 = vmatprep.mubr.f32.mxu0 0.0
        %759 = vmatmul.mubr.f32.gmra.mrb[0].mxu0 %v635
        %v760 = vpop.f32.mrb[0].mxu0
        %v761 = vadd.f32 %v657, %v760
        %v762 = vpop.f32.mrb[0].mxu0
        %763 = vdwg.mxu0
        %v764 = vrot.slane %v726, 4
        %v765 = vmax.f32 %v726, %v764
        %v766 = vrot.slane %v765, 2
        %v767 = vmax.f32 %v765, %v766
        %v768 = vrot.slane %v767, 1
        %v769 = vmax.f32 %v767, %v768
        %v770 = vrot.slane %v731, 4
        %v771 = vmax.f32 %v731, %v770
        %v772 = vrot.slane %v771, 2
        %v773 = vmax.f32 %v771, %v772
        %v774 = vrot.slane %v773, 1
        %v775 = vmax.f32 %v773, %v774
        %v776 = vrot.slane %v736, 4
        %v777 = vmax.f32 %v736, %v776
        %v778 = vrot.slane %v777, 2
        %v779 = vmax.f32 %v777, %v778
        %v780 = vrot.slane %v779, 1
        %v781 = vmax.f32 %v779, %v780
        %v782 = vrot.slane %v741, 4
        %v783 = vmax.f32 %v741, %v782
        %v784 = vrot.slane %v783, 2
        %v785 = vmax.f32 %v783, %v784
        %v786 = vrot.slane %v785, 1
        %v787 = vmax.f32 %v785, %v786
        %v788 = vrot.slane %v746, 4
        %v789 = vmax.f32 %v746, %v788
        %v790 = vrot.slane %v789, 2
        %v791 = vmax.f32 %v789, %v790
        %v792 = vrot.slane %v791, 1
        %v793 = vmax.f32 %v791, %v792
        %v794 = vrot.slane %v751, 4
        %v795 = vmax.f32 %v751, %v794
        %v796 = vrot.slane %v795, 2
        %v797 = vmax.f32 %v795, %v796
        %v798 = vrot.slane %v797, 1
        %v799 = vmax.f32 %v797, %v798
        %v800 = vrot.slane %v756, 4
        %v801 = vmax.f32 %v756, %v800
        %v802 = vrot.slane %v801, 2
        %v803 = vmax.f32 %v801, %v802
        %v804 = vrot.slane %v803, 1
        %v805 = vmax.f32 %v803, %v804
        %v806 = vrot.slane %v761, 4
        %v807 = vmax.f32 %v761, %v806
        %v808 = vrot.slane %v807, 2
        %v809 = vmax.f32 %v807, %v808
        %v810 = vrot.slane %v809, 1
        %v811 = vmax.f32 %v809, %v810
        %v812 = vsub.f32 %v726, %v769
        %v813 = vsub.f32 %v731, %v775
        %v814 = vsub.f32 %v736, %v781
        %v815 = vsub.f32 %v741, %v787
        %v816 = vsub.f32 %v746, %v793
        %v817 = vsub.f32 %v751, %v799
        %v818 = vsub.f32 %v756, %v805
        %v819 = vsub.f32 %v761, %v811
        %v820 = vmul.f32 %v812, 1.442695
        %v821 = vpow.pop %v820
        %v822 = vmul.f32 %v813, 1.442695
        %v823 = vpow.pop %v822
        %v824 = vmul.f32 %v814, 1.442695
        %v825 = vpow.pop %v824
        %v826 = vmul.f32 %v815, 1.442695
        %v827 = vpow.pop %v826
        %v828 = vmul.f32 %v816, 1.442695
        %v829 = vpow.pop %v828
        %v830 = vmul.f32 %v817, 1.442695
        %v831 = vpow.pop %v830
        %v832 = vmul.f32 %v818, 1.442695
        %v833 = vpow.pop %v832
        %v834 = vmul.f32 %v819, 1.442695
        %v835 = vpow.pop %v834
        %v836 = vrot.slane %v821, 4
        %v837 = vadd.f32 %v821, %v836
        %v838 = vrot.slane %v837, 2
        %v839 = vadd.f32 %v837, %v838
        %v840 = vrot.slane %v839, 1
        %v841 = vadd.f32 %v839, %v840
        %v842 = vrot.slane %v823, 4
        %v843 = vadd.f32 %v823, %v842
        %v844 = vrot.slane %v843, 2
        %v845 = vadd.f32 %v843, %v844
        %v846 = vrot.slane %v845, 1
        %v847 = vadd.f32 %v845, %v846
        %v848 = vrot.slane %v825, 4
        %v849 = vadd.f32 %v825, %v848
        %v850 = vrot.slane %v849, 2
        %v851 = vadd.f32 %v849, %v850
        %v852 = vrot.slane %v851, 1
        %v853 = vadd.f32 %v851, %v852
        %v854 = vrot.slane %v827, 4
        %v855 = vadd.f32 %v827, %v854
        %v856 = vrot.slane %v855, 2
        %v857 = vadd.f32 %v855, %v856
        %v858 = vrot.slane %v857, 1
        %v859 = vadd.f32 %v857, %v858
        %v860 = vrot.slane %v829, 4
        %v861 = vadd.f32 %v829, %v860
        %v862 = vrot.slane %v861, 2
        %v863 = vadd.f32 %v861, %v862
        %v864 = vrot.slane %v863, 1
        %v865 = vadd.f32 %v863, %v864
        %v866 = vrot.slane %v831, 4
        %v867 = vadd.f32 %v831, %v866
        %v868 = vrot.slane %v867, 2
        %v869 = vadd.f32 %v867, %v868
        %v870 = vrot.slane %v869, 1
        %v871 = vadd.f32 %v869, %v870
        %v872 = vrot.slane %v833, 4
        %v873 = vadd.f32 %v833, %v872
        %v874 = vrot.slane %v873, 2
        %v875 = vadd.f32 %v873, %v874
        %v876 = vrot.slane %v875, 1
        %v877 = vadd.f32 %v875, %v876
        %v878 = vrot.slane %v835, 4
        %v879 = vadd.f32 %v835, %v878
        %v880 = vrot.slane %v879, 2
        %v881 = vadd.f32 %v879, %v880
        %v882 = vrot.slane %v881, 1
        %v883 = vadd.f32 %v881, %v882
        %v884 = vrcp.pop %v841
        %v885 = vmul.f32 %v821, %v884
        %v886 = vrcp.pop %v847
        %v887 = vmul.f32 %v823, %v886
        %v888 = vrcp.pop %v853
        %v889 = vmul.f32 %v825, %v888
        %v890 = vrcp.pop %v859
        %v891 = vmul.f32 %v827, %v890
        %v892 = vrcp.pop %v865
        %v893 = vmul.f32 %v829, %v892
        %v894 = vrcp.pop %v871
        %v895 = vmul.f32 %v831, %v894
        %v896 = vrcp.pop %v877
        %v897 = vmul.f32 %v833, %v896
        %v898 = vrcp.pop %v883
        %v899 = vmul.f32 %v835, %v898
        %900 = vst [vmem:[%s340] sm:$0xff] %v885
        %901 = vst [vmem:[%s340 + $0x8] sm:$0xff] %v887
        %902 = vst [vmem:[%s340 + $0x10] sm:$0xff] %v889
        %903 = vst [vmem:[%s340 + $0x18] sm:$0xff] %v891
        %904 = vst [vmem:[%s340 + $0x20] sm:$0xff] %v893
        %905 = vst [vmem:[%s340 + $0x28] sm:$0xff] %v895
        %906 = vst [vmem:[%s340 + $0x30] sm:$0xff] %v897
        %907 = vst [vmem:[%s340 + $0x38] sm:$0xff] %v899
        %s908 = sand.u32 %s186, 1
        %s909 = scalar_lea.sflag [#allocation4], %s908
        %s910 = sand.u32 %s186, 1
        %s911 = smul.addr %s910, 64
        %s912 = scalar_lea.vmem [#allocation10], %s911
        // Predicated region
        $region65: #{tpu_custom_call.1} parent=47 // pred_check
          %p913 = pneg %p196
        $region66: #{tpu_custom_call.1} parent=47 // pred_check_branch
          %915 = sbr.rel (%p913) target = $region68
        $region67: #{tpu_custom_call.1} parent=47 // pred_region
          %s916 = smul.u32 8, %s26
          %s918 = ssub.s32 1024, 1024
          %919 = vsyncadd %s909, %s918
          %s920 = smul.addr %s916, 128
          %s921 = scalar_lea.hbm %s7, %s920
          %s922 = sshll.u32 %s912, 4
          %s923 = int_to_ptr.vmem [resolvable:$true] %s922
          %928 = dma.vmem_to_hbm [thread:$0]  %s923, 1024, %s921, %s909, 128, 128, 8
        $region68: #{tpu_custom_call.1} parent=47 // pred_fallthru
          _
      $region48: #{tpu_custom_call.1} parent=5 // pred_fallthru
        _
      %p929 = scmp.le.s32.totalorder 2, %s21
      // Predicated region
      $region69: #{tpu_custom_call.1} parent=5 // pred_check
        %p930 = pneg %p929
      $region70: #{tpu_custom_call.1} parent=5 // pred_check_branch
        %932 = sbr.rel (%p930) target = $region72
      $region71: #{tpu_custom_call.1} parent=5 // pred_region
        %s933 = ssub.s32 %s21, 2
        // Predicated region
        $region73: #{tpu_custom_call.1} parent=71 // pred_check
          %p934 = pneg %p202
        $region74: #{tpu_custom_call.1} parent=71 // pred_check_branch
          %936 = sbr.rel (%p934) target = $region76
        $region75: #{tpu_custom_call.1} parent=71 // pred_region
          %s937 = sand.u32 %s187, 1
          %s938 = scalar_lea.sflag [#allocation4], %s937
          %s939 = sand.u32 %s187, 1
          %s940 = smul.addr %s939, 64
          %s941 = scalar_lea.vmem [#allocation10], %s940
          %942 = dma.done %s938, 1024
        $region76: #{tpu_custom_call.1} parent=71 // pred_fallthru
          _
      $region72: #{tpu_custom_call.1} parent=5 // pred_fallthru
        _
    $region6: #{tpu_custom_call.1} parent=1 // loop_footer
      %s25 = sadd.s32 1, %s21
    $region7: #{tpu_custom_call.1} parent=1 // loop_footer_branch
      %20 = sbr.rel target = $region3
    $region8: #{tpu_custom_call.1} parent=1 // loop_exit
      _
    %943 = vsyncpa [#allocation3], 1
    %s944 = scalar_lea.sflag [#allocation3], 1
    %945 = vsyncpa %s944, 1
    %946 = vsyncpa [#allocation6], 1
    %947 = vsyncpa [#allocation9], 1
    %948 = vsyncpa [#allocation4], 1
    %s949 = scalar_lea.sflag [#allocation4], 1
    %950 = vsyncpa %s949, 1

</llo_original>
